<compile_context>
chip_gen: v5e
topology: v5e:2x2
jax: 0.10.0
libtpu: 0.0.40
codegen_flags: <defaults>
</compile_context>

<pallas_src>
import functools

import jax
import jax.numpy as jnp
import numpy as np
from jax.experimental import pallas as pl
from jax.experimental.pallas import tpu as pltpu


def _sigmoid_feature_kernel(x_ref, a_ref, b_ref, w_ref, o_ref, *, compute_dtype):
    # x_ref: (tb, tg)   activation tile (batch rows x gene lanes)
    # a_ref: (C, tg)    0.5 * slopes   (component axis on sublanes)
    # b_ref: (C, tg)    0.5 * biases
    # w_ref: (C, tg)    0.5 * softmax(weights, dim=-1)
    # o_ref: (tb, tg)
    n_components = a_ref.shape[0]

    x = x_ref[...].astype(compute_dtype)
    acc = jnp.full(x.shape, 0.5, dtype=compute_dtype)

    # n_components is small (10): statically unroll the weighted-tanh sum.
    # Each param row is a (1, tg) static slice; broadcasting against (tb, tg)
    # is a cheap sublane broadcast. All math is VPU/EUP elementwise work.
    for c in range(n_components):
        a = a_ref[pl.ds(c, 1), :].astype(compute_dtype)
        b = b_ref[pl.ds(c, 1), :].astype(compute_dtype)
        w = w_ref[pl.ds(c, 1), :].astype(compute_dtype)
        acc = acc + w * jnp.tanh(a * x + b)

    o_ref[...] = acc.astype(o_ref.dtype)


def prepare_params(slopes, biases, weights):
    """One-time conversion of PyTorch-layout (G, C) params to kernel layout.

    Returns (a_half, b_half, w_half), each (C, G):
      a_half = 0.5 * slopes^T
      b_half = 0.5 * biases^T
      w_half = 0.5 * softmax(weights, dim=-1)^T
    so the kernel only evaluates  0.5 + sum_c w_half*tanh(a_half*x + b_half).
    Call once per parameter update, NOT per forward call.
    """
    a_half = 0.5 * jnp.transpose(slopes)                               # (C, G)
    b_half = 0.5 * jnp.transpose(biases)                               # (C, G)
    w_half = 0.5 * jnp.transpose(jax.nn.softmax(weights, axis=-1))     # (C, G)
    return a_half, b_half, w_half


def _sublane_granularity(dtype):
    itemsize = jnp.dtype(dtype).itemsize
    return 8 * max(1, 4 // itemsize)   # 8 f32, 16 bf16, 32 int8/fp8


def _choose_tile(total, max_tile, granularity):
    """Tile size for a cdiv grid: a multiple of `granularity`, never more than
    the (granularity-rounded) axis length, never more than max_tile."""
    rounded = pl.cdiv(total, granularity) * granularity
    return max(granularity, min(max_tile, rounded))


@functools.partial(jax.jit,
                   static_argnames=("tile_batch", "tile_genes", "compute_dtype"))
def sigmoid_feature_forward(x, a_half, b_half, w_half, *,
                            tile_batch=256, tile_genes=4096,
                            compute_dtype=jnp.float32):
    """x: (B, G); a_half/b_half/w_half: (C, G) from prepare_params. Returns (B, G).

    compute_dtype=jnp.bfloat16 enables the packed-VPU/EUP path (use on v6e/v7x
    only; v5e has no bf16 VALU/EUP). Defaults keep the double-buffered working
    set well under the 32 MiB scoped-VMEM default on every generation.
    """
    B, G = x.shape
    C, Gc = a_half.shape
    assert Gc == G and b_half.shape == (C, G) and w_half.shape == (C, G)

    sub = _sublane_granularity(jnp.promote_types(x.dtype, compute_dtype))
    tb = _choose_tile(B, tile_batch, sub)    # sublane granularity
    tg = _choose_tile(G, tile_genes, 128)    # lane granularity

    # v7x has 2 TensorCores: make sure the 'parallel' grid has >= 2 steps when
    # the problem would otherwise collapse to a single tile.
    if pl.cdiv(G, tg) * pl.cdiv(B, tb) < 2:
        if tg >= 2 * 128:
            tg = pl.cdiv(tg // 2, 128) * 128
        elif tb >= 2 * sub:
            tb = pl.cdiv(tb // 2, sub) * sub

    # cdiv grid: edge blocks are padded/masked by Pallas, so a non-divisible
    # B or G never produces a whole-axis (VMEM-blowing) block.
    grid = (pl.cdiv(G, tg), pl.cdiv(B, tb))   # genes OUTER, batch INNER

    itemsize = jnp.dtype(x.dtype).itemsize
    cost = pl.CostEstimate(
        flops=4 * C * B * G,
        transcendentals=C * B * G,
        bytes_accessed=2 * B * G * itemsize + 3 * C * G * 4,
    )

    kernel = functools.partial(_sigmoid_feature_kernel, compute_dtype=compute_dtype)

    return pl.pallas_call(
        kernel,
        out_shape=jax.ShapeDtypeStruct((B, G), x.dtype),
        grid_spec=pltpu.PrefetchScalarGridSpec(
            num_scalar_prefetch=0,
            grid=grid,
            in_specs=[
                pl.BlockSpec((tb, tg), lambda g, b: (b, g)),  # x
                pl.BlockSpec((C, tg), lambda g, b: (0, g)),   # a_half
                pl.BlockSpec((C, tg), lambda g, b: (0, g)),   # b_half
                pl.BlockSpec((C, tg), lambda g, b: (0, g)),   # w_half
            ],
            out_specs=pl.BlockSpec((tb, tg), lambda g, b: (b, g)),
        ),
        compiler_params=pltpu.CompilerParams(
            dimension_semantics=("parallel", "parallel"),
        ),
        cost_estimate=cost,
    )(x, a_half, b_half, w_half)


def reference_forward(x, slopes, biases, weights):
    """Pure-JAX reference matching the PyTorch module exactly."""
    x_expanded = x[..., None]                                       # (B, G, 1)
    sig = jax.nn.sigmoid(slopes[None] * x_expanded + biases[None])  # (B, G, C)
    w_norm = jax.nn.softmax(weights, axis=-1)                       # (G, C)
    return jnp.sum(w_norm[None] * sig, axis=-1)                     # (B, G)


if __name__ == "__main__":
    # Small shapes consistent with the module: batch of cells x genes.
    B = 8
    n_genes = 256
    n_components = 10
    init_a, init_b = 1.0, 0.0

    key = jax.random.PRNGKey(0)
    kx, ka, kb = jax.random.split(key, 3)

    # Deterministic parameter init mirroring the PyTorch __init__:
    #   slopes  = init_a + 0.1 * randn
    #   biases  = init_b + 0.1 * randn
    #   weights = ones / n_components
    slopes = init_a + 0.1 * jax.random.normal(ka, (n_genes, n_components), jnp.float32)
    biases = init_b + 0.1 * jax.random.normal(kb, (n_genes, n_components), jnp.float32)
    weights = jnp.ones((n_genes, n_components), jnp.float32) / n_components

    x = jax.random.normal(kx, (B, n_genes), jnp.float32)

    # One-time param prep (transpose + softmax + constant folding), outside
    # the per-call forward path.
    a_half, b_half, w_half = prepare_params(slopes, biases, weights)

    out = sigmoid_feature_forward(x, a_half, b_half, w_half)
    out = jax.block_until_ready(out)

    ref = jax.block_until_ready(reference_forward(x, slopes, biases, weights))
    np.testing.assert_allclose(np.asarray(out), np.asarray(ref), rtol=1e-5, atol=1e-5)

    # TODO(synk): pretrain_on_cdf / _compute_cdf are host-side training utilities
    # (optimizer loop + per-gene sort) and are intentionally not kernelized.
    print("KERNEL_OK")
</pallas_src>

<mosaic_0001>
module attributes {stable_mosaic.version = 11 : i64} {
  func.func @_sigmoid_feature_kernel(%arg0: i32, %arg1: i32, %arg2: memref<8x128xf32, #tpu.memory_space<vmem>>, %arg3: memref<10x128xf32, #tpu.memory_space<vmem>>, %arg4: memref<10x128xf32, #tpu.memory_space<vmem>>, %arg5: memref<10x128xf32, #tpu.memory_space<vmem>>, %arg6: memref<8x128xf32, #tpu.memory_space<vmem>>) attributes {dimension_semantics = [#tpu.dimension_semantics<parallel>, #tpu.dimension_semantics<parallel>], iteration_bounds = array<i64: 2, 1>, scalar_prefetch = 0 : i64, scratch_operands = 0 : i64, tpu.core_type = #tpu.core_type<tc>, window_params = [{transform_indices = @transform_0, window_bounds = array<i64: 8, 128>}, {transform_indices = @transform_1, window_bounds = array<i64: 10, 128>}, {transform_indices = @transform_2, window_bounds = array<i64: 10, 128>}, {transform_indices = @transform_3, window_bounds = array<i64: 10, 128>}, {transform_indices = @transform_4, window_bounds = array<i64: 8, 128>}]} {
    %c0 = arith.constant 0 : index
    %c0_0 = arith.constant 0 : index
    %0 = vector.load %arg2[%c0, %c0_0] : memref<8x128xf32, #tpu.memory_space<vmem>>, vector<8x128xf32>
    %cst = arith.constant 5.000000e-01 : f32
    %1 = vector.broadcast %cst : f32 to vector<8x128xf32>
    %c0_1 = arith.constant 0 : index
    %c0_2 = arith.constant 0 : index
    %2 = vector.load %arg3[%c0_1, %c0_2] : memref<10x128xf32, #tpu.memory_space<vmem>>, vector<1x128xf32>
    %c0_3 = arith.constant 0 : index
    %c0_4 = arith.constant 0 : index
    %3 = vector.load %arg4[%c0_3, %c0_4] : memref<10x128xf32, #tpu.memory_space<vmem>>, vector<1x128xf32>
    %c0_5 = arith.constant 0 : index
    %c0_6 = arith.constant 0 : index
    %4 = vector.load %arg5[%c0_5, %c0_6] : memref<10x128xf32, #tpu.memory_space<vmem>>, vector<1x128xf32>
    %5 = vector.broadcast %2 : vector<1x128xf32> to vector<8x128xf32>
    %6 = arith.mulf %5, %0 : vector<8x128xf32>
    %7 = vector.broadcast %3 : vector<1x128xf32> to vector<8x128xf32>
    %8 = arith.addf %6, %7 : vector<8x128xf32>
    %9 = math.tanh %8 : vector<8x128xf32>
    %10 = vector.broadcast %4 : vector<1x128xf32> to vector<8x128xf32>
    %11 = arith.mulf %10, %9 : vector<8x128xf32>
    %12 = arith.addf %1, %11 : vector<8x128xf32>
    %c1 = arith.constant 1 : index
    %c0_7 = arith.constant 0 : index
    %13 = vector.load %arg3[%c1, %c0_7] : memref<10x128xf32, #tpu.memory_space<vmem>>, vector<1x128xf32>
    %c1_8 = arith.constant 1 : index
    %c0_9 = arith.constant 0 : index
    %14 = vector.load %arg4[%c1_8, %c0_9] : memref<10x128xf32, #tpu.memory_space<vmem>>, vector<1x128xf32>
    %c1_10 = arith.constant 1 : index
    %c0_11 = arith.constant 0 : index
    %15 = vector.load %arg5[%c1_10, %c0_11] : memref<10x128xf32, #tpu.memory_space<vmem>>, vector<1x128xf32>
    %16 = vector.broadcast %13 : vector<1x128xf32> to vector<8x128xf32>
    %17 = arith.mulf %16, %0 : vector<8x128xf32>
    %18 = vector.broadcast %14 : vector<1x128xf32> to vector<8x128xf32>
    %19 = arith.addf %17, %18 : vector<8x128xf32>
    %20 = math.tanh %19 : vector<8x128xf32>
    %21 = vector.broadcast %15 : vector<1x128xf32> to vector<8x128xf32>
    %22 = arith.mulf %21, %20 : vector<8x128xf32>
    %23 = arith.addf %12, %22 : vector<8x128xf32>
    %c2 = arith.constant 2 : index
    %c0_12 = arith.constant 0 : index
    %24 = vector.load %arg3[%c2, %c0_12] : memref<10x128xf32, #tpu.memory_space<vmem>>, vector<1x128xf32>
    %c2_13 = arith.constant 2 : index
    %c0_14 = arith.constant 0 : index
    %25 = vector.load %arg4[%c2_13, %c0_14] : memref<10x128xf32, #tpu.memory_space<vmem>>, vector<1x128xf32>
    %c2_15 = arith.constant 2 : index
    %c0_16 = arith.constant 0 : index
    %26 = vector.load %arg5[%c2_15, %c0_16] : memref<10x128xf32, #tpu.memory_space<vmem>>, vector<1x128xf32>
    %27 = vector.broadcast %24 : vector<1x128xf32> to vector<8x128xf32>
    %28 = arith.mulf %27, %0 : vector<8x128xf32>
    %29 = vector.broadcast %25 : vector<1x128xf32> to vector<8x128xf32>
    %30 = arith.addf %28, %29 : vector<8x128xf32>
    %31 = math.tanh %30 : vector<8x128xf32>
    %32 = vector.broadcast %26 : vector<1x128xf32> to vector<8x128xf32>
    %33 = arith.mulf %32, %31 : vector<8x128xf32>
    %34 = arith.addf %23, %33 : vector<8x128xf32>
    %c3 = arith.constant 3 : index
    %c0_17 = arith.constant 0 : index
    %35 = vector.load %arg3[%c3, %c0_17] : memref<10x128xf32, #tpu.memory_space<vmem>>, vector<1x128xf32>
    %c3_18 = arith.constant 3 : index
    %c0_19 = arith.constant 0 : index
    %36 = vector.load %arg4[%c3_18, %c0_19] : memref<10x128xf32, #tpu.memory_space<vmem>>, vector<1x128xf32>
    %c3_20 = arith.constant 3 : index
    %c0_21 = arith.constant 0 : index
    %37 = vector.load %arg5[%c3_20, %c0_21] : memref<10x128xf32, #tpu.memory_space<vmem>>, vector<1x128xf32>
    %38 = vector.broadcast %35 : vector<1x128xf32> to vector<8x128xf32>
    %39 = arith.mulf %38, %0 : vector<8x128xf32>
    %40 = vector.broadcast %36 : vector<1x128xf32> to vector<8x128xf32>
    %41 = arith.addf %39, %40 : vector<8x128xf32>
    %42 = math.tanh %41 : vector<8x128xf32>
    %43 = vector.broadcast %37 : vector<1x128xf32> to vector<8x128xf32>
    %44 = arith.mulf %43, %42 : vector<8x128xf32>
    %45 = arith.addf %34, %44 : vector<8x128xf32>
    %c4 = arith.constant 4 : index
    %c0_22 = arith.constant 0 : index
    %46 = vector.load %arg3[%c4, %c0_22] : memref<10x128xf32, #tpu.memory_space<vmem>>, vector<1x128xf32>
    %c4_23 = arith.constant 4 : index
    %c0_24 = arith.constant 0 : index
    %47 = vector.load %arg4[%c4_23, %c0_24] : memref<10x128xf32, #tpu.memory_space<vmem>>, vector<1x128xf32>
    %c4_25 = arith.constant 4 : index
    %c0_26 = arith.constant 0 : index
    %48 = vector.load %arg5[%c4_25, %c0_26] : memref<10x128xf32, #tpu.memory_space<vmem>>, vector<1x128xf32>
    %49 = vector.broadcast %46 : vector<1x128xf32> to vector<8x128xf32>
    %50 = arith.mulf %49, %0 : vector<8x128xf32>
    %51 = vector.broadcast %47 : vector<1x128xf32> to vector<8x128xf32>
    %52 = arith.addf %50, %51 : vector<8x128xf32>
    %53 = math.tanh %52 : vector<8x128xf32>
    %54 = vector.broadcast %48 : vector<1x128xf32> to vector<8x128xf32>
    %55 = arith.mulf %54, %53 : vector<8x128xf32>
    %56 = arith.addf %45, %55 : vector<8x128xf32>
    %c5 = arith.constant 5 : index
    %c0_27 = arith.constant 0 : index
    %57 = vector.load %arg3[%c5, %c0_27] : memref<10x128xf32, #tpu.memory_space<vmem>>, vector<1x128xf32>
    %c5_28 = arith.constant 5 : index
    %c0_29 = arith.constant 0 : index
    %58 = vector.load %arg4[%c5_28, %c0_29] : memref<10x128xf32, #tpu.memory_space<vmem>>, vector<1x128xf32>
    %c5_30 = arith.constant 5 : index
    %c0_31 = arith.constant 0 : index
    %59 = vector.load %arg5[%c5_30, %c0_31] : memref<10x128xf32, #tpu.memory_space<vmem>>, vector<1x128xf32>
    %60 = vector.broadcast %57 : vector<1x128xf32> to vector<8x128xf32>
    %61 = arith.mulf %60, %0 : vector<8x128xf32>
    %62 = vector.broadcast %58 : vector<1x128xf32> to vector<8x128xf32>
    %63 = arith.addf %61, %62 : vector<8x128xf32>
    %64 = math.tanh %63 : vector<8x128xf32>
    %65 = vector.broadcast %59 : vector<1x128xf32> to vector<8x128xf32>
    %66 = arith.mulf %65, %64 : vector<8x128xf32>
    %67 = arith.addf %56, %66 : vector<8x128xf32>
    %c6 = arith.constant 6 : index
    %c0_32 = arith.constant 0 : index
    %68 = vector.load %arg3[%c6, %c0_32] : memref<10x128xf32, #tpu.memory_space<vmem>>, vector<1x128xf32>
    %c6_33 = arith.constant 6 : index
    %c0_34 = arith.constant 0 : index
    %69 = vector.load %arg4[%c6_33, %c0_34] : memref<10x128xf32, #tpu.memory_space<vmem>>, vector<1x128xf32>
    %c6_35 = arith.constant 6 : index
    %c0_36 = arith.constant 0 : index
    %70 = vector.load %arg5[%c6_35, %c0_36] : memref<10x128xf32, #tpu.memory_space<vmem>>, vector<1x128xf32>
    %71 = vector.broadcast %68 : vector<1x128xf32> to vector<8x128xf32>
    %72 = arith.mulf %71, %0 : vector<8x128xf32>
    %73 = vector.broadcast %69 : vector<1x128xf32> to vector<8x128xf32>
    %74 = arith.addf %72, %73 : vector<8x128xf32>
    %75 = math.tanh %74 : vector<8x128xf32>
    %76 = vector.broadcast %70 : vector<1x128xf32> to vector<8x128xf32>
    %77 = arith.mulf %76, %75 : vector<8x128xf32>
    %78 = arith.addf %67, %77 : vector<8x128xf32>
    %c7 = arith.constant 7 : index
    %c0_37 = arith.constant 0 : index
    %79 = vector.load %arg3[%c7, %c0_37] : memref<10x128xf32, #tpu.memory_space<vmem>>, vector<1x128xf32>
    %c7_38 = arith.constant 7 : index
    %c0_39 = arith.constant 0 : index
    %80 = vector.load %arg4[%c7_38, %c0_39] : memref<10x128xf32, #tpu.memory_space<vmem>>, vector<1x128xf32>
    %c7_40 = arith.constant 7 : index
    %c0_41 = arith.constant 0 : index
    %81 = vector.load %arg5[%c7_40, %c0_41] : memref<10x128xf32, #tpu.memory_space<vmem>>, vector<1x128xf32>
    %82 = vector.broadcast %79 : vector<1x128xf32> to vector<8x128xf32>
    %83 = arith.mulf %82, %0 : vector<8x128xf32>
    %84 = vector.broadcast %80 : vector<1x128xf32> to vector<8x128xf32>
    %85 = arith.addf %83, %84 : vector<8x128xf32>
    %86 = math.tanh %85 : vector<8x128xf32>
    %87 = vector.broadcast %81 : vector<1x128xf32> to vector<8x128xf32>
    %88 = arith.mulf %87, %86 : vector<8x128xf32>
    %89 = arith.addf %78, %88 : vector<8x128xf32>
    %c8 = arith.constant 8 : index
    %c0_42 = arith.constant 0 : index
    %90 = vector.load %arg3[%c8, %c0_42] : memref<10x128xf32, #tpu.memory_space<vmem>>, vector<1x128xf32>
    %c8_43 = arith.constant 8 : index
    %c0_44 = arith.constant 0 : index
    %91 = vector.load %arg4[%c8_43, %c0_44] : memref<10x128xf32, #tpu.memory_space<vmem>>, vector<1x128xf32>
    %c8_45 = arith.constant 8 : index
    %c0_46 = arith.constant 0 : index
    %92 = vector.load %arg5[%c8_45, %c0_46] : memref<10x128xf32, #tpu.memory_space<vmem>>, vector<1x128xf32>
    %93 = vector.broadcast %90 : vector<1x128xf32> to vector<8x128xf32>
    %94 = arith.mulf %93, %0 : vector<8x128xf32>
    %95 = vector.broadcast %91 : vector<1x128xf32> to vector<8x128xf32>
    %96 = arith.addf %94, %95 : vector<8x128xf32>
    %97 = math.tanh %96 : vector<8x128xf32>
    %98 = vector.broadcast %92 : vector<1x128xf32> to vector<8x128xf32>
    %99 = arith.mulf %98, %97 : vector<8x128xf32>
    %100 = arith.addf %89, %99 : vector<8x128xf32>
    %c9 = arith.constant 9 : index
    %c0_47 = arith.constant 0 : index
    %101 = vector.load %arg3[%c9, %c0_47] : memref<10x128xf32, #tpu.memory_space<vmem>>, vector<1x128xf32>
    %c9_48 = arith.constant 9 : index
    %c0_49 = arith.constant 0 : index
    %102 = vector.load %arg4[%c9_48, %c0_49] : memref<10x128xf32, #tpu.memory_space<vmem>>, vector<1x128xf32>
    %c9_50 = arith.constant 9 : index
    %c0_51 = arith.constant 0 : index
    %103 = vector.load %arg5[%c9_50, %c0_51] : memref<10x128xf32, #tpu.memory_space<vmem>>, vector<1x128xf32>
    %104 = vector.broadcast %101 : vector<1x128xf32> to vector<8x128xf32>
    %105 = arith.mulf %104, %0 : vector<8x128xf32>
    %106 = vector.broadcast %102 : vector<1x128xf32> to vector<8x128xf32>
    %107 = arith.addf %105, %106 : vector<8x128xf32>
    %108 = math.tanh %107 : vector<8x128xf32>
    %109 = vector.broadcast %103 : vector<1x128xf32> to vector<8x128xf32>
    %110 = arith.mulf %109, %108 : vector<8x128xf32>
    %111 = arith.addf %100, %110 : vector<8x128xf32>
    %c0_52 = arith.constant 0 : index
    %c0_53 = arith.constant 0 : index
    %112 = vector.load %arg6[%c0_52, %c0_53] : memref<8x128xf32, #tpu.memory_space<vmem>>, vector<8x128xf32>
    tpu.vector_store %arg6[%c0_52, %c0_53], %111 {strides = array<i32>} : memref<8x128xf32, #tpu.memory_space<vmem>>, vector<8x128xf32>,
    return
  }
  func.func @transform_0(%arg0: i32, %arg1: i32) -> (i32, i32) {
    %c0_i32 = arith.constant 0 : i32
    return %arg1, %arg0 : i32, i32
  }
  func.func @transform_1(%arg0: i32, %arg1: i32) -> (i32, i32) {
    %c0_i32 = arith.constant 0 : i32
    %c0_i32_0 = arith.constant 0 : i32
    return %c0_i32, %arg0 : i32, i32
  }
  func.func @transform_2(%arg0: i32, %arg1: i32) -> (i32, i32) {
    %c0_i32 = arith.constant 0 : i32
    %c0_i32_0 = arith.constant 0 : i32
    return %c0_i32, %arg0 : i32, i32
  }
  func.func @transform_3(%arg0: i32, %arg1: i32) -> (i32, i32) {
    %c0_i32 = arith.constant 0 : i32
    %c0_i32_0 = arith.constant 0 : i32
    return %c0_i32, %arg0 : i32, i32
  }
  func.func @transform_4(%arg0: i32, %arg1: i32) -> (i32, i32) {
    %c0_i32 = arith.constant 0 : i32
    return %arg1, %arg0 : i32, i32
  }
}

</mosaic_0001>

<llo_original>
// kernel: sigmoid_feature_forward.1
$region0: #{sigmoid_feature_forward.1}
  #allocation0 [shape = 'u32[]', space=smem, size = 0x4, offset = 0x4, fixed_abs, tag = 'smem constant byte address 0x4 - core index']
  #allocation1 [shape = 'u32[72,128]{1,0:T(1,128)}', space=vmem, size = 0x9000, scoped, tag = 'internal scratch']
  %s0 = inlined_call_operand.hbm [shape: f32[8,256], index: 0, kind: input, shape index: {}]
  %s1 = inlined_call_operand.hbm [shape: f32[10,256], index: 1, kind: input, shape index: {}]
  %s2 = inlined_call_operand.hbm [shape: f32[10,256], index: 2, kind: input, shape index: {}]
  %s3 = inlined_call_operand.hbm [shape: f32[10,256], index: 3, kind: input, shape index: {}]
  %s4 = inlined_call_operand.hbm [shape: f32[8,256], index: 4, kind: output, shape index: {}]
  %s5 = sld [smem:[#allocation0]]
  $region65: #{sigmoid_feature_forward.1} parent=0
    _
  %s7 = ssub.s32 1, %s5
  %s8 = scalar_select 0, %s7, %s5
  $region1: #{sigmoid_feature_forward.1} parent=0
    #allocation2 [shape = 'u8[8192]{0}', space=vmem, size = 0x2000, scoped, tag = 'input window, operand 0']
    #allocation3 [shape = 's32[2]{0}', space=sflag, size = 0x8, scoped, tag = 'scoped memory for sigmoid_feature_forward.1']
    #allocation4 [shape = 's32[2]{0}', space=sflag, size = 0x8, scoped, tag = 'scoped memory for sigmoid_feature_forward.1']
    #allocation5 [shape = 'u8[16384]{0}', space=vmem, size = 0x4000, scoped, tag = 'input window, operand 1']
    #allocation6 [shape = 's32[2]{0}', space=sflag, size = 0x8, scoped, tag = 'scoped memory for sigmoid_feature_forward.1']
    #allocation7 [shape = 'u8[16384]{0}', space=vmem, size = 0x4000, scoped, tag = 'input window, operand 2']
    #allocation8 [shape = 'u8[16384]{0}', space=vmem, size = 0x4000, scoped, tag = 'input window, operand 3']
    #allocation9 [shape = 's32[2]{0}', space=sflag, size = 0x8, scoped, tag = 'scoped memory for sigmoid_feature_forward.1']
    #allocation10 [shape = 'u8[8192]{0}', space=vmem, size = 0x2000, scoped, tag = 'output window, operand 0']
    %9 = vsyncpa [#allocation3], 0
    %s10 = scalar_lea.sflag [#allocation3], 1
    %11 = vsyncpa %s10, 0
    %12 = vsyncpa [#allocation6], 0
    %s13 = scalar_lea.sflag [#allocation6], 1
    %14 = vsyncpa %s13, 0
    %15 = vsyncpa [#allocation9], 0
    %s16 = scalar_lea.sflag [#allocation9], 1
    %17 = vsyncpa %s16, 0
    %18 = vsyncpa [#allocation4], 0
    %s19 = scalar_lea.sflag [#allocation4], 1
    %20 = vsyncpa %s19, 0
    loop: start=0, step=1, limit=4
    $region2: #{sigmoid_feature_forward.1} parent=1 // loop_pre_header
      _
    $region3: #{sigmoid_feature_forward.1} parent=1 // loop_header
      %s22 = sphi 0, %s26
      %p23 = scmp.ge.s32.totalorder %s22, 4
      %s29 = sphi 0, %s41
      %s30 = sphi 0, %s37
      %s31 = sphi 0, %s29
      %s32 = sphi 0, %s30
      %s33 = sphi 0, %s31
      %s34 = sphi 0, %s32
      %s46 = sphi 0, %s48
      %s49 = sphi 0, %s46
      %s50 = sphi 0, %s49
      %s66 = sphi 0, %s50
      %s72 = sphi 0, %s74
      %s75 = sphi 0, %s72
      %s76 = sphi 0, %s75
      %s92 = sphi 0, %s76
      %s98 = sphi 0, %s100
      %s101 = sphi 0, %s98
      %s102 = sphi 0, %s101
      %s118 = sphi 0, %s102
      %s124 = sphi 0, %s126
      %s127 = sphi 0, %s124
      %s128 = sphi 0, %s127
      %s144 = sphi 0, %s128
      %s152 = sphi 0, %s154
      %s155 = sphi 0, %s152
      %s156 = sphi 0, %s155
      %s172 = sphi 0, %s156
    $region4: #{sigmoid_feature_forward.1} parent=1 // loop_header_branch
      %25 = sbr.rel (%p23) target = $region8
    $region5: #{sigmoid_feature_forward.1} parent=1 // loop_body
      %s27 = ssub.s32 %s22, 1
      %s28 = ssub.s32 %s22, 2
      %s35 = sadd.s32 1, %s30
      %p36 = scmp.ge.s32.totalorder %s35, 1
      %s37 = scalar_select %p36, 0, %s35
      %s38 = sadd.s32 1, %s29
      %s39 = scalar_select %p36, %s38, %s29
      %p40 = scmp.ge.s32.totalorder %s39, 2
      %s41 = scalar_select %p40, 0, %s39
      %s42 = ssub.s32 %s30, %s37
      %s43 = ssub.s32 %s29, %s41
      %s44 = sor.u32 %s42, %s43
      %p45 = scmp.eq.s32.totalorder %s44, 0
      %s47 = sadd.s32 %s46, 1
      %s48 = scalar_select %p45, %s46, %s47
      %p51 = pneg %p45
      %p52 = scmp.eq.s32.totalorder %s22, 1
      %p53 = por %p51, %p52
      %p54 = scmp.ne.s32.totalorder %s46, %s49
      %p55 = scmp.eq.s32.totalorder %s22, 0
      %p56 = por %p54, %p55
      %p57 = scmp.ne.s32.totalorder %s46, %s49
      %p58 = scmp.eq.s32.totalorder %s27, 1
      %p59 = por %p57, %p58
      %p60 = scmp.ne.s32.totalorder %s49, %s50
      %p61 = scmp.eq.s32.totalorder %s27, 0
      %p62 = por %p60, %p61
      %p63 = scmp.ne.s32.totalorder %s49, %s50
      %p64 = scmp.eq.s32.totalorder %s28, 1
      %p65 = por %p63, %p64
      %p67 = scmp.ne.s32.totalorder %s50, %s66
      %p68 = scmp.eq.s32.totalorder %s28, 0
      %p69 = por %p67, %p68
      %s70 = ssub.s32 %s29, %s41
      %p71 = scmp.eq.s32.totalorder %s70, 0
      %s73 = sadd.s32 %s72, 1
      %s74 = scalar_select %p71, %s72, %s73
      %p77 = pneg %p71
      %p78 = scmp.eq.s32.totalorder %s22, 1
      %p79 = por %p77, %p78
      %p80 = scmp.ne.s32.totalorder %s72, %s75
      %p81 = scmp.eq.s32.totalorder %s22, 0
      %p82 = por %p80, %p81
      %p83 = scmp.ne.s32.totalorder %s72, %s75
      %p84 = scmp.eq.s32.totalorder %s27, 1
      %p85 = por %p83, %p84
      %p86 = scmp.ne.s32.totalorder %s75, %s76
      %p87 = scmp.eq.s32.totalorder %s27, 0
      %p88 = por %p86, %p87
      %p89 = scmp.ne.s32.totalorder %s75, %s76
      %p90 = scmp.eq.s32.totalorder %s28, 1
      %p91 = por %p89, %p90
      %p93 = scmp.ne.s32.totalorder %s76, %s92
      %p94 = scmp.eq.s32.totalorder %s28, 0
      %p95 = por %p93, %p94
      %s96 = ssub.s32 %s29, %s41
      %p97 = scmp.eq.s32.totalorder %s96, 0
      %s99 = sadd.s32 %s98, 1
      %s100 = scalar_select %p97, %s98, %s99
      %p103 = pneg %p97
      %p104 = scmp.eq.s32.totalorder %s22, 1
      %p105 = por %p103, %p104
      %p106 = scmp.ne.s32.totalorder %s98, %s101
      %p107 = scmp.eq.s32.totalorder %s22, 0
      %p108 = por %p106, %p107
      %p109 = scmp.ne.s32.totalorder %s98, %s101
      %p110 = scmp.eq.s32.totalorder %s27, 1
      %p111 = por %p109, %p110
      %p112 = scmp.ne.s32.totalorder %s101, %s102
      %p113 = scmp.eq.s32.totalorder %s27, 0
      %p114 = por %p112, %p113
      %p115 = scmp.ne.s32.totalorder %s101, %s102
      %p116 = scmp.eq.s32.totalorder %s28, 1
      %p117 = por %p115, %p116
      %p119 = scmp.ne.s32.totalorder %s102, %s118
      %p120 = scmp.eq.s32.totalorder %s28, 0
      %p121 = por %p119, %p120
      %s122 = ssub.s32 %s29, %s41
      %p123 = scmp.eq.s32.totalorder %s122, 0
      %s125 = sadd.s32 %s124, 1
      %s126 = scalar_select %p123, %s124, %s125
      %p129 = pneg %p123
      %p130 = scmp.eq.s32.totalorder %s22, 1
      %p131 = por %p129, %p130
      %p132 = scmp.ne.s32.totalorder %s124, %s127
      %p133 = scmp.eq.s32.totalorder %s22, 0
      %p134 = por %p132, %p133
      %p135 = scmp.ne.s32.totalorder %s124, %s127
      %p136 = scmp.eq.s32.totalorder %s27, 1
      %p137 = por %p135, %p136
      %p138 = scmp.ne.s32.totalorder %s127, %s128
      %p139 = scmp.eq.s32.totalorder %s27, 0
      %p140 = por %p138, %p139
      %p141 = scmp.ne.s32.totalorder %s127, %s128
      %p142 = scmp.eq.s32.totalorder %s28, 1
      %p143 = por %p141, %p142
      %p145 = scmp.ne.s32.totalorder %s128, %s144
      %p146 = scmp.eq.s32.totalorder %s28, 0
      %p147 = por %p145, %p146
      %s148 = ssub.s32 %s30, %s37
      %s149 = ssub.s32 %s29, %s41
      %s150 = sor.u32 %s148, %s149
      %p151 = scmp.eq.s32.totalorder %s150, 0
      %s153 = sadd.s32 %s152, 1
      %s154 = scalar_select %p151, %s152, %s153
      %p157 = pneg %p151
      %p158 = scmp.eq.s32.totalorder %s22, 1
      %p159 = por %p157, %p158
      %p160 = scmp.ne.s32.totalorder %s152, %s155
      %p161 = scmp.eq.s32.totalorder %s22, 0
      %p162 = por %p160, %p161
      %p163 = scmp.ne.s32.totalorder %s152, %s155
      %p164 = scmp.eq.s32.totalorder %s27, 1
      %p165 = por %p163, %p164
      %p166 = scmp.ne.s32.totalorder %s155, %s156
      %p167 = scmp.eq.s32.totalorder %s27, 0
      %p168 = por %p166, %p167
      %p169 = scmp.ne.s32.totalorder %s155, %s156
      %p170 = scmp.eq.s32.totalorder %s28, 1
      %p171 = por %p169, %p170
      %p173 = scmp.ne.s32.totalorder %s156, %s172
      %p174 = scmp.eq.s32.totalorder %s28, 0
      %p175 = por %p173, %p174
      %p176 = scmp.le.s32.totalorder 1, %s22
      %p177 = scmp.lt.s32.totalorder %s22, 3
      %p178 = pnand %p176, %p177
      %p179 = pneg %p178
      // Predicated region
      $region9: #{sigmoid_feature_forward.1} parent=5 // pred_check
        _
      $region10: #{sigmoid_feature_forward.1} parent=5 // pred_check_branch
        %181 = sbr.rel (%p178) target = $region12
      $region11: #{sigmoid_feature_forward.1} parent=5 // pred_region
        %s182 = ssub.s32 %s22, 1
      $region12: #{sigmoid_feature_forward.1} parent=5 // pred_fallthru
        _
      %p183 = scmp.lt.s32.totalorder %s22, 2
      // Predicated region
      $region13: #{sigmoid_feature_forward.1} parent=5 // pred_check
        %p184 = pneg %p183
      $region14: #{sigmoid_feature_forward.1} parent=5 // pred_check_branch
        %186 = sbr.rel (%p184) target = $region16
      $region15: #{sigmoid_feature_forward.1} parent=5 // pred_region
        // Predicated region
        $region17: #{sigmoid_feature_forward.1} parent=15 // pred_check
          %p187 = pneg %p56
        $region18: #{sigmoid_feature_forward.1} parent=15 // pred_check_branch
          %189 = sbr.rel (%p187) target = $region20
        $region19: #{sigmoid_feature_forward.1} parent=15 // pred_region
          %s190 = sand.u32 %s46, 1
          %s191 = scalar_lea.sflag [#allocation3], %s190
          %s192 = sand.u32 %s46, 1
          %s193 = smul.addr %s192, 8
          %s194 = scalar_lea.vmem [#allocation2], %s193
          %196 = vsyncadd %s191, 0
          %s197 = smul.addr %s30, 2
          %s198 = sadd.s32 %s29, %s197
          %s199 = smul.addr %s198, 8
          %s200 = scalar_lea.hbm %s0, %s199
          %s202 = sshll.u32 %s200, 4
          %s203 = int_to_ptr.hbm [resolvable:$true] %s202
          %s204 = sshll.u32 %s194, 4
          %s205 = int_to_ptr.vmem [resolvable:$true] %s204
          %207 = dma.hbm_to_vmem [thread:$0]  %s203, 128, %s205, %s191
        $region20: #{sigmoid_feature_forward.1} parent=15 // pred_fallthru
          _
        // Predicated region
        $region21: #{sigmoid_feature_forward.1} parent=15 // pred_check
          %p208 = pneg %p82
        $region22: #{sigmoid_feature_forward.1} parent=15 // pred_check_branch
          %210 = sbr.rel (%p208) target = $region24
        $region23: #{sigmoid_feature_forward.1} parent=15 // pred_region
          %s211 = sand.u32 %s22, 1
          %s212 = scalar_lea.sflag [#allocation6], %s211
          %s213 = sand.u32 %s72, 1
          %s214 = smul.addr %s213, 16
          %s215 = scalar_lea.vmem [#allocation5], %s214
          %217 = vsyncadd %s212, 0
          %s218 = smul.addr %s29, 8
          %s219 = scalar_lea.hbm %s1, %s218
          %s220 = sshll.u32 %s219, 4
          %s221 = int_to_ptr.hbm [resolvable:$true] %s220
          %s222 = sshll.u32 %s215, 4
          %s223 = int_to_ptr.vmem [resolvable:$true] %s222
          %228 = dma.hbm_to_vmem [thread:$0]  %s221, 256, %s223, %s212, 256, 128, 8
        $region24: #{sigmoid_feature_forward.1} parent=15 // pred_fallthru
          _
        // Predicated region
        $region25: #{sigmoid_feature_forward.1} parent=15 // pred_check
          %p229 = pneg %p108
        $region26: #{sigmoid_feature_forward.1} parent=15 // pred_check_branch
          %231 = sbr.rel (%p229) target = $region28
        $region27: #{sigmoid_feature_forward.1} parent=15 // pred_region
          %s232 = sand.u32 %s22, 1
          %s233 = scalar_lea.sflag [#allocation6], %s232
          %s234 = sand.u32 %s98, 1
          %s235 = smul.addr %s234, 16
          %s236 = scalar_lea.vmem [#allocation7], %s235
          %238 = vsyncadd %s233, 0
          %s239 = smul.addr %s29, 8
          %s240 = scalar_lea.hbm %s2, %s239
          %s241 = sshll.u32 %s240, 4
          %s242 = int_to_ptr.hbm [resolvable:$true] %s241
          %s243 = sshll.u32 %s236, 4
          %s244 = int_to_ptr.vmem [resolvable:$true] %s243
          %249 = dma.hbm_to_vmem [thread:$0]  %s242, 256, %s244, %s233, 256, 128, 8
        $region28: #{sigmoid_feature_forward.1} parent=15 // pred_fallthru
          _
        // Predicated region
        $region29: #{sigmoid_feature_forward.1} parent=15 // pred_check
          %p250 = pneg %p134
        $region30: #{sigmoid_feature_forward.1} parent=15 // pred_check_branch
          %252 = sbr.rel (%p250) target = $region32
        $region31: #{sigmoid_feature_forward.1} parent=15 // pred_region
          %s253 = sand.u32 %s124, 1
          %s254 = scalar_lea.sflag [#allocation9], %s253
          %s255 = sand.u32 %s124, 1
          %s256 = smul.addr %s255, 16
          %s257 = scalar_lea.vmem [#allocation8], %s256
          %259 = vsyncadd %s254, 0
          %s260 = smul.addr %s29, 8
          %s261 = scalar_lea.hbm %s3, %s260
          %s262 = sshll.u32 %s261, 4
          %s263 = int_to_ptr.hbm [resolvable:$true] %s262
          %s264 = sshll.u32 %s257, 4
          %s265 = int_to_ptr.vmem [resolvable:$true] %s264
          %270 = dma.hbm_to_vmem [thread:$0]  %s263, 256, %s265, %s254, 256, 128, 8
        $region32: #{sigmoid_feature_forward.1} parent=15 // pred_fallthru
          _
      $region16: #{sigmoid_feature_forward.1} parent=5 // pred_fallthru
        _
      %p271 = scmp.le.s32.totalorder 1, %s22
      %p272 = scmp.lt.s32.totalorder %s22, 3
      %p273 = pnand %p271, %p272
      %p274 = pneg %p273
      // Predicated region
      $region33: #{sigmoid_feature_forward.1} parent=5 // pred_check
        _
      $region34: #{sigmoid_feature_forward.1} parent=5 // pred_check_branch
        %276 = sbr.rel (%p273) target = $region36
      $region35: #{sigmoid_feature_forward.1} parent=5 // pred_region
        %s277 = ssub.s32 %s22, 1
        %s278 = sand.u32 %s49, 1
        %s279 = scalar_lea.sflag [#allocation3], %s278
        %s280 = sand.u32 %s49, 1
        %s281 = smul.addr %s280, 8
        %s282 = scalar_lea.vmem [#allocation2], %s281
        // Predicated region
        $region37: #{sigmoid_feature_forward.1} parent=35 // pred_check
          %p283 = pneg %p62
        $region38: #{sigmoid_feature_forward.1} parent=35 // pred_check_branch
          %285 = sbr.rel (%p283) target = $region40
        $region39: #{sigmoid_feature_forward.1} parent=35 // pred_region
          %287 = dma.done %s279, 128
        $region40: #{sigmoid_feature_forward.1} parent=35 // pred_fallthru
          _
        %s288 = sand.u32 %s27, 1
        %s289 = scalar_lea.sflag [#allocation6], %s288
        %s290 = sand.u32 %s75, 1
        %s291 = smul.addr %s290, 16
        %s292 = scalar_lea.vmem [#allocation5], %s291
        // Predicated region
        $region41: #{sigmoid_feature_forward.1} parent=35 // pred_check
          %p293 = pneg %p88
        $region42: #{sigmoid_feature_forward.1} parent=35 // pred_check_branch
          %295 = sbr.rel (%p293) target = $region44
        $region43: #{sigmoid_feature_forward.1} parent=35 // pred_region
          %297 = dma.done %s289, 256
        $region44: #{sigmoid_feature_forward.1} parent=35 // pred_fallthru
          _
        %s298 = sand.u32 %s27, 1
        %s299 = scalar_lea.sflag [#allocation6], %s298
        %s300 = sand.u32 %s101, 1
        %s301 = smul.addr %s300, 16
        %s302 = scalar_lea.vmem [#allocation7], %s301
        // Predicated region
        $region45: #{sigmoid_feature_forward.1} parent=35 // pred_check
          %p303 = pneg %p114
        $region46: #{sigmoid_feature_forward.1} parent=35 // pred_check_branch
          %305 = sbr.rel (%p303) target = $region48
        $region47: #{sigmoid_feature_forward.1} parent=35 // pred_region
          %307 = dma.done %s299, 256
        $region48: #{sigmoid_feature_forward.1} parent=35 // pred_fallthru
          _
        %s308 = sand.u32 %s127, 1
        %s309 = scalar_lea.sflag [#allocation9], %s308
        %s310 = sand.u32 %s127, 1
        %s311 = smul.addr %s310, 16
        %s312 = scalar_lea.vmem [#allocation8], %s311
        // Predicated region
        $region49: #{sigmoid_feature_forward.1} parent=35 // pred_check
          %p313 = pneg %p140
        $region50: #{sigmoid_feature_forward.1} parent=35 // pred_check_branch
          %315 = sbr.rel (%p313) target = $region52
        $region51: #{sigmoid_feature_forward.1} parent=35 // pred_region
          %317 = dma.done %s309, 256
        $region52: #{sigmoid_feature_forward.1} parent=35 // pred_fallthru
          _
        %s318 = sand.u32 %s49, 1
        %s319 = scalar_lea.sflag [#allocation3], %s318
        %s320 = sand.u32 %s49, 1
        %s321 = smul.addr %s320, 8
        %s322 = scalar_lea.vmem [#allocation2], %s321
        %p323 = pneg %p62
        %p324 = pneg %p59
        %s325 = sand.u32 %s27, 1
        %s326 = scalar_lea.sflag [#allocation6], %s325
        %s327 = sand.u32 %s75, 1
        %s328 = smul.addr %s327, 16
        %s329 = scalar_lea.vmem [#allocation5], %s328
        %p330 = pneg %p88
        %p331 = pneg %p85
        %s332 = sand.u32 %s27, 1
        %s333 = scalar_lea.sflag [#allocation6], %s332
        %s334 = sand.u32 %s101, 1
        %s335 = smul.addr %s334, 16
        %s336 = scalar_lea.vmem [#allocation7], %s335
        %p337 = pneg %p114
        %p338 = pneg %p111
        %s339 = sand.u32 %s127, 1
        %s340 = scalar_lea.sflag [#allocation9], %s339
        %s341 = sand.u32 %s127, 1
        %s342 = smul.addr %s341, 16
        %s343 = scalar_lea.vmem [#allocation8], %s342
        %p344 = pneg %p140
        %p345 = pneg %p137
        %p346 = pneg %p168
        %p347 = pneg %p165
        %s348 = sand.u32 %s155, 1
        %s349 = scalar_lea.sflag [#allocation4], %s348
        %s350 = sand.u32 %s155, 1
        %s351 = smul.addr %s350, 8
        %s352 = scalar_lea.vmem [#allocation10], %s351
        %v353 = vld [vmem:[%s282] sm:$0xff]
        %v354 = vld [vmem:[%s292] sm:$0x1]
        %v355 = vld [vmem:[%s302] sm:$0x1]
        %v356 = vld [vmem:[%s312] sm:$0x1]
        %v357 = vperm.slane %v354, 0
        %v358 = vmul.f32 %v357, %v353
        %v359 = vperm.slane %v355, 0
        %v360 = vadd.f32 %v358, %v359
        %v361 = vtanh.pop %v360
        %v362 = vperm.slane %v356, 0
        %v363 = vmul.f32 %v362, %v361
        %v364 = vadd.f32 %v363, 0.5
        %v365 = vld [vmem:[%s292 + $0x1] sm:$0x1]
        %v366 = vld [vmem:[%s302 + $0x1] sm:$0x1]
        %v367 = vld [vmem:[%s312 + $0x1] sm:$0x1]
        %v368 = vperm.slane %v365, 0
        %v369 = vmul.f32 %v368, %v353
        %v370 = vperm.slane %v366, 0
        %v371 = vadd.f32 %v369, %v370
        %v372 = vtanh.pop %v371
        %v373 = vperm.slane %v367, 0
        %v374 = vmul.f32 %v373, %v372
        %v375 = vadd.f32 %v364, %v374
        %v376 = vld [vmem:[%s292 + $0x2] sm:$0x1]
        %v377 = vld [vmem:[%s302 + $0x2] sm:$0x1]
        %v378 = vld [vmem:[%s312 + $0x2] sm:$0x1]
        %v379 = vperm.slane %v376, 0
        %v380 = vmul.f32 %v379, %v353
        %v381 = vperm.slane %v377, 0
        %v382 = vadd.f32 %v380, %v381
        %v383 = vtanh.pop %v382
        %v384 = vperm.slane %v378, 0
        %v385 = vmul.f32 %v384, %v383
        %v386 = vadd.f32 %v375, %v385
        %v387 = vld [vmem:[%s292 + $0x3] sm:$0x1]
        %v388 = vld [vmem:[%s302 + $0x3] sm:$0x1]
        %v389 = vld [vmem:[%s312 + $0x3] sm:$0x1]
        %v390 = vperm.slane %v387, 0
        %v391 = vmul.f32 %v390, %v353
        %v392 = vperm.slane %v388, 0
        %v393 = vadd.f32 %v391, %v392
        %v394 = vtanh.pop %v393
        %v395 = vperm.slane %v389, 0
        %v396 = vmul.f32 %v395, %v394
        %v397 = vadd.f32 %v386, %v396
        %v398 = vld [vmem:[%s292 + $0x4] sm:$0x1]
        %v399 = vld [vmem:[%s302 + $0x4] sm:$0x1]
        %v400 = vld [vmem:[%s312 + $0x4] sm:$0x1]
        %v401 = vperm.slane %v398, 0
        %v402 = vmul.f32 %v401, %v353
        %v403 = vperm.slane %v399, 0
        %v404 = vadd.f32 %v402, %v403
        %v405 = vtanh.pop %v404
        %v406 = vperm.slane %v400, 0
        %v407 = vmul.f32 %v406, %v405
        %v408 = vadd.f32 %v397, %v407
        %v409 = vld [vmem:[%s292 + $0x5] sm:$0x1]
        %v410 = vld [vmem:[%s302 + $0x5] sm:$0x1]
        %v411 = vld [vmem:[%s312 + $0x5] sm:$0x1]
        %v412 = vperm.slane %v409, 0
        %v413 = vmul.f32 %v412, %v353
        %v414 = vperm.slane %v410, 0
        %v415 = vadd.f32 %v413, %v414
        %v416 = vtanh.pop %v415
        %v417 = vperm.slane %v411, 0
        %v418 = vmul.f32 %v417, %v416
        %v419 = vadd.f32 %v408, %v418
        %v420 = vld [vmem:[%s292 + $0x6] sm:$0x1]
        %v421 = vld [vmem:[%s302 + $0x6] sm:$0x1]
        %v422 = vld [vmem:[%s312 + $0x6] sm:$0x1]
        %v423 = vperm.slane %v420, 0
        %v424 = vmul.f32 %v423, %v353
        %v425 = vperm.slane %v421, 0
        %v426 = vadd.f32 %v424, %v425
        %v427 = vtanh.pop %v426
        %v428 = vperm.slane %v422, 0
        %v429 = vmul.f32 %v428, %v427
        %v430 = vadd.f32 %v419, %v429
        %v431 = vld [vmem:[%s292 + $0x7] sm:$0x1]
        %v432 = vld [vmem:[%s302 + $0x7] sm:$0x1]
        %v433 = vld [vmem:[%s312 + $0x7] sm:$0x1]
        %v434 = vperm.slane %v431, 0
        %v435 = vmul.f32 %v434, %v353
        %v436 = vperm.slane %v432, 0
        %v437 = vadd.f32 %v435, %v436
        %v438 = vtanh.pop %v437
        %v439 = vperm.slane %v433, 0
        %v440 = vmul.f32 %v439, %v438
        %v441 = vadd.f32 %v430, %v440
        %v442 = vld [vmem:[%s292 + $0x8] sm:$0x1]
        %v443 = vld [vmem:[%s302 + $0x8] sm:$0x1]
        %v444 = vld [vmem:[%s312 + $0x8] sm:$0x1]
        %v445 = vperm.slane %v442, 0
        %v446 = vmul.f32 %v445, %v353
        %v447 = vperm.slane %v443, 0
        %v448 = vadd.f32 %v446, %v447
        %v449 = vtanh.pop %v448
        %v450 = vperm.slane %v444, 0
        %v451 = vmul.f32 %v450, %v449
        %v452 = vadd.f32 %v441, %v451
        %v453 = vld [vmem:[%s292 + $0x9] sm:$0x1]
        %v454 = vld [vmem:[%s302 + $0x9] sm:$0x1]
        %v455 = vld [vmem:[%s312 + $0x9] sm:$0x1]
        %v456 = vperm.slane %v453, 0
        %v457 = vmul.f32 %v456, %v353
        %v458 = vperm.slane %v454, 0
        %v459 = vadd.f32 %v457, %v458
        %v460 = vtanh.pop %v459
        %v461 = vperm.slane %v455, 0
        %v462 = vmul.f32 %v461, %v460
        %v463 = vadd.f32 %v452, %v462
        %464 = vst [vmem:[%s352] sm:$0xff] %v463
        %s465 = sand.u32 %s155, 1
        %s466 = scalar_lea.sflag [#allocation4], %s465
        %s467 = sand.u32 %s155, 1
        %s468 = smul.addr %s467, 8
        %s469 = scalar_lea.vmem [#allocation10], %s468
        // Predicated region
        $region53: #{sigmoid_feature_forward.1} parent=35 // pred_check
          %p470 = pneg %p165
        $region54: #{sigmoid_feature_forward.1} parent=35 // pred_check_branch
          %472 = sbr.rel (%p470) target = $region56
        $region55: #{sigmoid_feature_forward.1} parent=35 // pred_region
          %474 = vsyncadd %s466, 0
          %s475 = smul.addr %s32, 2
          %s476 = sadd.s32 %s31, %s475
          %s477 = smul.addr %s476, 8
          %s478 = scalar_lea.hbm %s4, %s477
          %s480 = sshll.u32 %s469, 4
          %s481 = int_to_ptr.vmem [resolvable:$true] %s480
          %s482 = sshll.u32 %s478, 4
          %s483 = int_to_ptr.hbm [resolvable:$true] %s482
          %485 = dma.vmem_to_hbm [thread:$0]  %s481, 128, %s483, %s466
        $region56: #{sigmoid_feature_forward.1} parent=35 // pred_fallthru
          _
      $region36: #{sigmoid_feature_forward.1} parent=5 // pred_fallthru
        _
      %p486 = scmp.le.s32.totalorder 2, %s22
      // Predicated region
      $region57: #{sigmoid_feature_forward.1} parent=5 // pred_check
        %p487 = pneg %p486
      $region58: #{sigmoid_feature_forward.1} parent=5 // pred_check_branch
        %489 = sbr.rel (%p487) target = $region60
      $region59: #{sigmoid_feature_forward.1} parent=5 // pred_region
        %s490 = ssub.s32 %s22, 2
        // Predicated region
        $region61: #{sigmoid_feature_forward.1} parent=59 // pred_check
          %p491 = pneg %p171
        $region62: #{sigmoid_feature_forward.1} parent=59 // pred_check_branch
          %493 = sbr.rel (%p491) target = $region64
        $region63: #{sigmoid_feature_forward.1} parent=59 // pred_region
          %s494 = sand.u32 %s156, 1
          %s495 = scalar_lea.sflag [#allocation4], %s494
          %s496 = sand.u32 %s156, 1
          %s497 = smul.addr %s496, 8
          %s498 = scalar_lea.vmem [#allocation10], %s497
          %500 = dma.done %s495, 128
        $region64: #{sigmoid_feature_forward.1} parent=59 // pred_fallthru
          _
      $region60: #{sigmoid_feature_forward.1} parent=5 // pred_fallthru
        _
    $region6: #{sigmoid_feature_forward.1} parent=1 // loop_footer
      %s26 = sadd.s32 1, %s22
    $region7: #{sigmoid_feature_forward.1} parent=1 // loop_footer_branch
      %21 = sbr.rel target = $region3
    $region8: #{sigmoid_feature_forward.1} parent=1 // loop_exit
      _
    %501 = vsyncpa [#allocation3], 1
    %s502 = scalar_lea.sflag [#allocation3], 1
    %503 = vsyncpa %s502, 1
    %504 = vsyncpa [#allocation6], 1
    %s505 = scalar_lea.sflag [#allocation6], 1
    %506 = vsyncpa %s505, 1
    %507 = vsyncpa [#allocation9], 1
    %s508 = scalar_lea.sflag [#allocation9], 1
    %509 = vsyncpa %s508, 1
    %510 = vsyncpa [#allocation4], 1
    %s511 = scalar_lea.sflag [#allocation4], 1
    %512 = vsyncpa %s511, 1

</llo_original>
